<compile_context>
chip_gen: v7x
topology: tpu7x:2x2x1
jax: 0.10.0
libtpu: 0.0.40
codegen_flags: <defaults>
</compile_context>

<pallas_src>
import functools

import jax
import jax.numpy as jnp
from jax.experimental import pallas as pl
from jax.experimental.pallas import tpu as pltpu


def _round_up(x, m):
    return (x + m - 1) // m * m


# ----------------------------------------------------------------------------
# Fused kernel: backbone (M x K grid) -> merged projector L1 -> merged L2 heads
# ----------------------------------------------------------------------------

def _fused_forward_kernel(
    x_ref, wb_ref, bb_ref, pw1_ref, pb1_ref, w2_ref, b2_ref,
    z_ref, c_ref, acc_ref, *, feat_pad, class_num):
    k = pl.program_id(1)

    @pl.when(k == 0)
    def _():
        acc_ref[...] = jnp.zeros_like(acc_ref)

    # Backbone partial product: bf16 operands on the MXU, f32 accumulation.
    acc_ref[...] += jnp.dot(x_ref[...], wb_ref[...],
                            preferred_element_type=jnp.float32)

    @pl.when(k == pl.num_programs(1) - 1)
    def _():
        # Stand-in resnet epilogue: bias + ReLU (f32), cast only for the MXU.
        h = jnp.maximum(acc_ref[...] + bb_ref[...], 0.0).astype(jnp.bfloat16)

        # Merged first Linear of both projectors: (tm, 2*Rp).
        t = jnp.dot(h, pw1_ref[...], preferred_element_type=jnp.float32)
        t = jnp.maximum(t + pb1_ref[...], 0.0).astype(jnp.bfloat16)

        # Merged (block-diagonal) second Linear: one MXU pass -> (tm, Dp + Cp).
        y = jnp.dot(t, w2_ref[...], preferred_element_type=jnp.float32) + b2_ref[...]
        y_z = y[:, :feat_pad]      # lane-aligned split (feat_pad % 128 == 0)
        y_c = y[:, feat_pad:]

        # torch.nn.functional.normalize(y, dim=1): padded feature columns are
        # exact zeros (zero-padded weights/bias), so the reduction needs no mask.
        sq = jnp.sum(y_z * y_z, axis=1, keepdims=True)
        z_ref[...] = y_z * jax.lax.rsqrt(sq + 1e-24)

        # Softmax(dim=1) masked to the real class columns.
        col = jax.lax.broadcasted_iota(jnp.int32, y_c.shape, 1)
        valid = col < class_num
        y_c = jnp.where(valid, y_c, -jnp.inf)
        m = jnp.max(y_c, axis=1, keepdims=True)
        e = jnp.where(valid, jnp.exp(y_c - m), 0.0)
        denom = jnp.sum(e, axis=1, keepdims=True)
        c_ref[...] = e * pl.reciprocal(denom, approx=True)


# ----------------------------------------------------------------------------
# One-time parameter preparation: pad, cast to bf16, merge projector layers.
# Padded rows/columns are exact zeros (the kernel relies on this invariant for
# the unmasked L2-norm reduction).
# ----------------------------------------------------------------------------

def prepare_params(params):
    in_features, rep_dim = params["wb"].shape
    feature_dim = params["iw2"].shape[1]
    class_num = params["cw2"].shape[1]

    Fp = _round_up(in_features, 128)   # lane for x, sublane for wb
    Rp = _round_up(rep_dim, 128)
    Dp = _round_up(feature_dim, 128)
    Cp = _round_up(class_num, 128)

    def pad2(a, r, c, dtype):
        return jnp.pad(a, ((0, r - a.shape[0]), (0, c - a.shape[1]))).astype(dtype)

    wb = pad2(params["wb"], Fp, Rp, jnp.bfloat16)
    bb = pad2(params["bb"], 1, Rp, jnp.float32)

    # Merge instance / cluster first Linear layers along the output axis.
    pw1 = jnp.concatenate([pad2(params["iw1"], Rp, Rp, jnp.bfloat16),
                           pad2(params["cw1"], Rp, Rp, jnp.bfloat16)], axis=1)
    pb1 = jnp.concatenate([pad2(params["ib1"], 1, Rp, jnp.float32),
                           pad2(params["cb1"], 1, Rp, jnp.float32)], axis=1)

    # Block-diagonal merge of the two second Linear layers:
    #   [ iw2   0  ]
    #   [  0   cw2 ]  -> single (2*Rp, Dp+Cp) matmul in the kernel epilogue.
    iw2 = pad2(params["iw2"], Rp, Dp, jnp.bfloat16)
    cw2 = pad2(params["cw2"], Rp, Cp, jnp.bfloat16)
    w2 = jnp.concatenate(
        [jnp.concatenate([iw2, jnp.zeros((Rp, Cp), jnp.bfloat16)], axis=1),
         jnp.concatenate([jnp.zeros((Rp, Dp), jnp.bfloat16), cw2], axis=1)],
        axis=0)
    b2 = jnp.concatenate([pad2(params["ib2"], 1, Dp, jnp.float32),
                          pad2(params["cb2"], 1, Cp, jnp.float32)], axis=1)

    prepared = dict(wb=wb, bb=bb, pw1=pw1, pb1=pb1, w2=w2, b2=b2)
    meta = dict(in_features=in_features, rep_dim=rep_dim,
                feature_dim=feature_dim, class_num=class_num,
                Fp=Fp, Rp=Rp, Dp=Dp, Cp=Cp)
    return prepared, meta


# ----------------------------------------------------------------------------
# Forward wrapper (activation pad / cast + single pallas_call)
# ----------------------------------------------------------------------------

def network_forward(prepared, x_i, x_j, *, meta, tk_pref=512, tm_pref=256):
    B = x_i.shape[0]
    in_features = meta["in_features"]
    feature_dim = meta["feature_dim"]
    class_num = meta["class_num"]
    Fp, Rp, Dp, Cp = meta["Fp"], meta["Rp"], meta["Dp"], meta["Cp"]

    # --- batch (M) tiling: multiple of 16 (bf16 sublanes); <=tm_pref per block.
    M = 2 * B
    m16 = _round_up(max(M, 16), 16)
    tm = m16 if m16 <= tm_pref else tm_pref
    Mp = _round_up(max(M, tm), tm)
    n_m = Mp // tm

    # --- K tiling: tk is a multiple of 128 that divides Fp exactly.
    tk = max(128, min(tk_pref, Fp) // 128 * 128)
    while Fp % tk:
        tk -= 128
    nk = Fp // tk

    # Stack both views (resnet(x_i), resnet(x_j) share weights), flatten, pad,
    # cast.  Under jit the reshape+concat+pad+cast fuse into a single HLO pass
    # producing the bf16 activation slab the kernel streams.
    x = jnp.concatenate([x_i.reshape(B, -1), x_j.reshape(B, -1)], axis=0)
    xb = jnp.pad(x, ((0, Mp - M), (0, Fp - in_features))).astype(jnp.bfloat16)

    grid_spec = pltpu.PrefetchScalarGridSpec(
        num_scalar_prefetch=0,
        grid=(n_m, nk),
        in_specs=[
            pl.BlockSpec((tm, tk), lambda i, k: (i, k)),            # x (M,K tiled)
            pl.BlockSpec((tk, Rp), lambda i, k: (k, 0)),            # backbone W
            pl.BlockSpec((1, Rp), lambda i, k: (0, 0)),             # backbone b
            pl.BlockSpec((Rp, 2 * Rp), lambda i, k: (0, 0)),        # merged proj W1
            pl.BlockSpec((1, 2 * Rp), lambda i, k: (0, 0)),         # merged proj b1
            pl.BlockSpec((2 * Rp, Dp + Cp), lambda i, k: (0, 0)),   # block-diag W2
            pl.BlockSpec((1, Dp + Cp), lambda i, k: (0, 0)),        # merged b2
        ],
        out_specs=[
            pl.BlockSpec((tm, Dp), lambda i, k: (i, 0)),            # z block
            pl.BlockSpec((tm, Cp), lambda i, k: (i, 0)),            # c block
        ],
        scratch_shapes=[pltpu.VMEM((tm, Rp), jnp.float32)],
    )

    # Explicit VMEM limit derived from the actual block footprint (2x for
    # double-buffered pipelining), clamped to a per-generation-safe 32 MiB.
    vmem_est = (
        2 * (tm * tk * 2 + tk * Rp * 2)                          # x, wb tiles
        + 2 * (Rp * 2 * Rp * 2 + 2 * Rp * (Dp + Cp) * 2)         # pw1, w2
        + 2 * 8 * (Rp + 2 * Rp + (Dp + Cp)) * 4                  # biases (padded)
        + 2 * tm * (Dp + Cp) * 4                                 # outputs
        + tm * Rp * 4)                                           # accumulator
    vmem_limit = int(min(max(2 * vmem_est, 4 << 20), 32 << 20))

    flops = 2 * Mp * (Fp * Rp + 2 * Rp * Rp + 2 * Rp * (Dp + Cp))
    bytes_accessed = (
        2 * (xb.size + prepared["wb"].size + prepared["pw1"].size
             + prepared["w2"].size)                               # bf16 operands
        + 4 * (prepared["bb"].size + prepared["pb1"].size
               + prepared["b2"].size)                             # f32 biases
        + 4 * Mp * (Dp + Cp))                                     # f32 outputs
    cost = pl.CostEstimate(flops=flops, transcendentals=Mp * (Cp + 2),
                           bytes_accessed=bytes_accessed)

    z_pad, c_pad = pl.pallas_call(
        functools.partial(_fused_forward_kernel, feat_pad=Dp, class_num=class_num),
        out_shape=(jax.ShapeDtypeStruct((Mp, Dp), jnp.float32),
                   jax.ShapeDtypeStruct((Mp, Cp), jnp.float32)),
        grid_spec=grid_spec,
        compiler_params=pltpu.CompilerParams(
            dimension_semantics=("parallel", "arbitrary"),  # M parallel, K reduce
            vmem_limit_bytes=vmem_limit),
        cost_estimate=cost,
    )(xb, prepared["wb"], prepared["bb"], prepared["pw1"], prepared["pb1"],
      prepared["w2"], prepared["b2"])

    z_i = z_pad[:B, :feature_dim]
    z_j = z_pad[B:M, :feature_dim]
    c_i = c_pad[:B, :class_num]
    c_j = c_pad[B:M, :class_num]
    return z_i, z_j, c_i, c_j


# ----------------------------------------------------------------------------
# Parameter init (matches nn.Linear default init; logical/unpadded shapes)
# ----------------------------------------------------------------------------

def init_params(key, in_features, rep_dim, feature_dim, class_num):
    ks = jax.random.split(key, 10)

    def lin(kw, kb, fan_in, fan_out):
        scale = 1.0 / jnp.sqrt(jnp.float32(fan_in))
        w = jax.random.uniform(kw, (fan_in, fan_out), jnp.float32, -scale, scale)
        b = jax.random.uniform(kb, (1, fan_out), jnp.float32, -scale, scale)
        return w, b

    wb, bb = lin(ks[0], ks[1], in_features, rep_dim)      # stand-in resnet
    iw1, ib1 = lin(ks[2], ks[3], rep_dim, rep_dim)        # instance proj L1
    iw2, ib2 = lin(ks[4], ks[5], rep_dim, feature_dim)    # instance proj L2
    cw1, cb1 = lin(ks[6], ks[7], rep_dim, rep_dim)        # cluster proj L1
    cw2, cb2 = lin(ks[8], ks[9], rep_dim, class_num)      # cluster proj L2

    return dict(wb=wb, bb=bb,
                iw1=iw1, ib1=ib1, iw2=iw2, ib2=ib2,
                cw1=cw1, cb1=cb1, cw2=cw2, cb2=cb2)


if __name__ == "__main__":
    B, C, H, W = 2, 4, 16, 16
    rep_dim, feature_dim, class_num = 32, 16, 8

    key = jax.random.PRNGKey(0)
    k_params, k_xi, k_xj = jax.random.split(key, 3)

    params = init_params(k_params, C * H * W, rep_dim, feature_dim, class_num)
    x_i = jax.random.normal(k_xi, (B, C, H, W), jnp.float32)
    x_j = jax.random.normal(k_xj, (B, C, H, W), jnp.float32)

    # Pad / cast / merge the weights ONCE (hoisted out of the forward).
    prepared, meta = prepare_params(params)
    prepared = jax.tree_util.tree_map(jax.block_until_ready, prepared)

    forward = jax.jit(lambda p, a, b: network_forward(p, a, b, meta=meta))
    z_i, z_j, c_i, c_j = forward(prepared, x_i, x_j)
    jax.block_until_ready((z_i, z_j, c_i, c_j))

    assert z_i.shape == (B, feature_dim) and z_j.shape == (B, feature_dim)
    assert c_i.shape == (B, class_num) and c_j.shape == (B, class_num)
    # Semantic sanity: softmax rows sum to 1 and are non-negative, normalized
    # rows have unit norm (loose tolerance: bf16 MXU operands + approx softmax
    # reciprocal).
    assert jnp.allclose(jnp.sum(c_i, axis=1), 1.0, atol=1e-2)
    assert jnp.allclose(jnp.sum(c_j, axis=1), 1.0, atol=1e-2)
    assert bool(jnp.all(c_i >= 0.0)) and bool(jnp.all(c_j >= 0.0))
    assert jnp.allclose(jnp.linalg.norm(z_i, axis=1), 1.0, atol=1e-2)
    assert jnp.allclose(jnp.linalg.norm(z_j, axis=1), 1.0, atol=1e-2)

    print("KERNEL_OK")
</pallas_src>

<mosaic_0001>
module attributes {stable_mosaic.version = 11 : i64} {
  func.func @_fused_forward_kernel(%arg0: i32, %arg1: i32, %arg2: memref<16x512xbf16, #tpu.memory_space<vmem>>, %arg3: memref<512x128xbf16, #tpu.memory_space<vmem>>, %arg4: memref<1x128xf32, #tpu.memory_space<vmem>>, %arg5: memref<128x256xbf16, #tpu.memory_space<vmem>>, %arg6: memref<1x256xf32, #tpu.memory_space<vmem>>, %arg7: memref<256x256xbf16, #tpu.memory_space<vmem>>, %arg8: memref<1x256xf32, #tpu.memory_space<vmem>>, %arg9: memref<16x128xf32, #tpu.memory_space<vmem>>, %arg10: memref<16x128xf32, #tpu.memory_space<vmem>>, %arg11: memref<16x128xf32, #tpu.memory_space<vmem>>) attributes {dimension_semantics = [#tpu.dimension_semantics<parallel>, #tpu.dimension_semantics<arbitrary>], iteration_bounds = array<i64: 1, 2>, scalar_prefetch = 0 : i64, scratch_operands = 1 : i64, tpu.core_type = #tpu.core_type<tc>, window_params = [{transform_indices = @transform_0, window_bounds = array<i64: 16, 512>}, {transform_indices = @transform_1, window_bounds = array<i64: 512, 128>}, {pipeline_mode = #tpu.pipeline_mode<synchronous>, transform_indices = @transform_2, window_bounds = array<i64: 1, 128>}, {pipeline_mode = #tpu.pipeline_mode<synchronous>, transform_indices = @transform_3, window_bounds = array<i64: 128, 256>}, {pipeline_mode = #tpu.pipeline_mode<synchronous>, transform_indices = @transform_4, window_bounds = array<i64: 1, 256>}, {pipeline_mode = #tpu.pipeline_mode<synchronous>, transform_indices = @transform_5, window_bounds = array<i64: 256, 256>}, {pipeline_mode = #tpu.pipeline_mode<synchronous>, transform_indices = @transform_6, window_bounds = array<i64: 1, 256>}, {transform_indices = @transform_7, window_bounds = array<i64: 16, 128>}, {transform_indices = @transform_8, window_bounds = array<i64: 16, 128>}]} {
    %c0_i32 = arith.constant 0 : i32
    %0 = arith.cmpi eq, %arg1, %c0_i32 : i32
    %1 = arith.extui %0 : i1 to i32
    %c0_i32_0 = arith.constant 0 : i32
    %2 = arith.cmpi ne, %1, %c0_i32_0 : i32
    scf.if %2 {
      %cst_9 = arith.constant 0.000000e+00 : f32
      %12 = vector.broadcast %cst_9 : f32 to vector<16x128xf32>
      %c0_10 = arith.constant 0 : index
      %c0_11 = arith.constant 0 : index
      %13 = vector.load %arg11[%c0_10, %c0_11] : memref<16x128xf32, #tpu.memory_space<vmem>>, vector<16x128xf32>
      tpu.vector_store %arg11[%c0_10, %c0_11], %12 {strides = array<i32>} : memref<16x128xf32, #tpu.memory_space<vmem>>, vector<16x128xf32>,
    } else {
    }
    %c0 = arith.constant 0 : index
    %c0_1 = arith.constant 0 : index
    %3 = vector.load %arg11[%c0, %c0_1] : memref<16x128xf32, #tpu.memory_space<vmem>>, vector<16x128xf32>
    %c0_2 = arith.constant 0 : index
    %c0_3 = arith.constant 0 : index
    %4 = vector.load %arg2[%c0_2, %c0_3] : memref<16x512xbf16, #tpu.memory_space<vmem>>, vector<16x512xbf16>
    %c0_4 = arith.constant 0 : index
    %c0_5 = arith.constant 0 : index
    %5 = vector.load %arg3[%c0_4, %c0_5] : memref<512x128xbf16, #tpu.memory_space<vmem>>, vector<512x128xbf16>
    %cst = arith.constant dense<0.000000e+00> : vector<16x128xf32>
    %6 = tpu.matmul %4, %5, %cst {dimension_numbers = #tpu.dot_dimension_numbers<[1], [0], [0], [1], [0, 0, 1, 1], [], []>} : vector<16x512xbf16>, vector<512x128xbf16>, vector<16x128xf32> -> vector<16x128xf32>
    %7 = arith.addf %3, %6 : vector<16x128xf32>
    %c0_6 = arith.constant 0 : index
    %c0_7 = arith.constant 0 : index
    %8 = vector.load %arg11[%c0_6, %c0_7] : memref<16x128xf32, #tpu.memory_space<vmem>>, vector<16x128xf32>
    tpu.vector_store %arg11[%c0_6, %c0_7], %7 {strides = array<i32>} : memref<16x128xf32, #tpu.memory_space<vmem>>, vector<16x128xf32>,
    %c1_i32 = arith.constant 1 : i32
    %9 = arith.cmpi eq, %arg1, %c1_i32 : i32
    %10 = arith.extui %9 : i1 to i32
    %c0_i32_8 = arith.constant 0 : i32
    %11 = arith.cmpi ne, %10, %c0_i32_8 : i32
    scf.if %11 {
      %c0_9 = arith.constant 0 : index
      %c0_10 = arith.constant 0 : index
      %12 = vector.load %arg11[%c0_9, %c0_10] : memref<16x128xf32, #tpu.memory_space<vmem>>, vector<16x128xf32>
      %c0_11 = arith.constant 0 : index
      %c0_12 = arith.constant 0 : index
      %13 = vector.load %arg4[%c0_11, %c0_12] : memref<1x128xf32, #tpu.memory_space<vmem>>, vector<1x128xf32>
      %14 = vector.broadcast %13 : vector<1x128xf32> to vector<16x128xf32>
      %15 = arith.addf %12, %14 : vector<16x128xf32>
      %cst_13 = arith.constant 0.000000e+00 : f32
      %16 = vector.broadcast %cst_13 : f32 to vector<16x128xf32>
      %17 = arith.maximumf %15, %16 : vector<16x128xf32>
      %18 = arith.truncf %17 : vector<16x128xf32> to vector<16x128xbf16>
      %c0_14 = arith.constant 0 : index
      %c0_15 = arith.constant 0 : index
      %19 = vector.load %arg5[%c0_14, %c0_15] : memref<128x256xbf16, #tpu.memory_space<vmem>>, vector<128x256xbf16>
      %cst_16 = arith.constant dense<0.000000e+00> : vector<16x256xf32>
      %20 = tpu.matmul %18, %19, %cst_16 {dimension_numbers = #tpu.dot_dimension_numbers<[1], [0], [0], [1], [0, 0, 1, 1], [], []>} : vector<16x128xbf16>, vector<128x256xbf16>, vector<16x256xf32> -> vector<16x256xf32>
      %c0_17 = arith.constant 0 : index
      %c0_18 = arith.constant 0 : index
      %21 = vector.load %arg6[%c0_17, %c0_18] : memref<1x256xf32, #tpu.memory_space<vmem>>, vector<1x256xf32>
      %22 = vector.broadcast %21 : vector<1x256xf32> to vector<16x256xf32>
      %23 = arith.addf %20, %22 : vector<16x256xf32>
      %cst_19 = arith.constant 0.000000e+00 : f32
      %24 = vector.broadcast %cst_19 : f32 to vector<16x256xf32>
      %25 = arith.maximumf %23, %24 : vector<16x256xf32>
      %26 = arith.truncf %25 : vector<16x256xf32> to vector<16x256xbf16>
      %c0_20 = arith.constant 0 : index
      %c0_21 = arith.constant 0 : index
      %27 = vector.load %arg7[%c0_20, %c0_21] : memref<256x256xbf16, #tpu.memory_space<vmem>>, vector<256x256xbf16>
      %cst_22 = arith.constant dense<0.000000e+00> : vector<16x256xf32>
      %28 = tpu.matmul %26, %27, %cst_22 {dimension_numbers = #tpu.dot_dimension_numbers<[1], [0], [0], [1], [0, 0, 1, 1], [], []>} : vector<16x256xbf16>, vector<256x256xbf16>, vector<16x256xf32> -> vector<16x256xf32>
      %c0_23 = arith.constant 0 : index
      %c0_24 = arith.constant 0 : index
      %29 = vector.load %arg8[%c0_23, %c0_24] : memref<1x256xf32, #tpu.memory_space<vmem>>, vector<1x256xf32>
      %30 = vector.broadcast %29 : vector<1x256xf32> to vector<16x256xf32>
      %31 = arith.addf %28, %30 : vector<16x256xf32>
      %32 = vector.extract_strided_slice %31 {offsets = [0, 0], sizes = [16, 128], strides = [1, 1]} : vector<16x256xf32> to vector<16x128xf32>
      %33 = vector.extract_strided_slice %31 {offsets = [0, 128], sizes = [16, 128], strides = [1, 1]} : vector<16x256xf32> to vector<16x128xf32>
      %34 = arith.mulf %32, %32 : vector<16x128xf32>
      %cst_25 = arith.constant dense<0.000000e+00> : vector<16xf32>
      %35 = vector.multi_reduction <add>, %34, %cst_25 [1] : vector<16x128xf32> to vector<16xf32>
      %36 = vector.shape_cast %35 : vector<16xf32> to vector<16x1xf32>
      %cst_26 = arith.constant 1.000000e-24 : f32
      %37 = vector.broadcast %cst_26 : f32 to vector<16x1xf32>
      %38 = arith.addf %36, %37 : vector<16x1xf32>
      %39 = math.rsqrt %38 : vector<16x1xf32>
      %40 = vector.broadcast %39 : vector<16x1xf32> to vector<16x128xf32>
      %41 = arith.mulf %32, %40 : vector<16x128xf32>
      %c0_27 = arith.constant 0 : index
      %c0_28 = arith.constant 0 : index
      %42 = vector.load %arg9[%c0_27, %c0_28] : memref<16x128xf32, #tpu.memory_space<vmem>>, vector<16x128xf32>
      tpu.vector_store %arg9[%c0_27, %c0_28], %41 {strides = array<i32>} : memref<16x128xf32, #tpu.memory_space<vmem>>, vector<16x128xf32>,
      %43 = tpu.iota {dimensions = array<i32: 1>} : vector<16x128xi32>
      %c8_i32 = arith.constant 8 : i32
      %44 = vector.broadcast %c8_i32 : i32 to vector<16x128xi32>
      %45 = arith.cmpi slt, %43, %44 : vector<16x128xi32>
      %cst_29 = arith.constant 0xFF800000 : f32
      %46 = vector.broadcast %cst_29 : f32 to vector<16x128xf32>
      %47 = arith.select %45, %33, %46 : vector<16x128xi1>, vector<16x128xf32>
      %cst_30 = arith.constant dense<0xFF800000> : vector<16xf32>
      %48 = vector.multi_reduction <maximumf>, %47, %cst_30 [1] : vector<16x128xf32> to vector<16xf32>
      %49 = vector.shape_cast %48 : vector<16xf32> to vector<16x1xf32>
      %50 = vector.broadcast %49 : vector<16x1xf32> to vector<16x128xf32>
      %51 = arith.subf %47, %50 : vector<16x128xf32>
      %52 = math.exp %51 : vector<16x128xf32>
      %cst_31 = arith.constant 0.000000e+00 : f32
      %53 = vector.broadcast %cst_31 : f32 to vector<16x128xf32>
      %54 = arith.select %45, %52, %53 : vector<16x128xi1>, vector<16x128xf32>
      %cst_32 = arith.constant dense<0.000000e+00> : vector<16xf32>
      %55 = vector.multi_reduction <add>, %54, %cst_32 [1] : vector<16x128xf32> to vector<16xf32>
      %56 = vector.shape_cast %55 : vector<16xf32> to vector<16x1xf32>
      %57 = tpu.reciprocal %56 {approx = true} : vector<16x1xf32> -> vector<16x1xf32>
      %58 = vector.broadcast %57 : vector<16x1xf32> to vector<16x128xf32>
      %59 = arith.mulf %54, %58 : vector<16x128xf32>
      %c0_33 = arith.constant 0 : index
      %c0_34 = arith.constant 0 : index
      %60 = vector.load %arg10[%c0_33, %c0_34] : memref<16x128xf32, #tpu.memory_space<vmem>>, vector<16x128xf32>
      tpu.vector_store %arg10[%c0_33, %c0_34], %59 {strides = array<i32>} : memref<16x128xf32, #tpu.memory_space<vmem>>, vector<16x128xf32>,
    } else {
    }
    return
  }
  func.func @transform_0(%arg0: i32, %arg1: i32) -> (i32, i32) {
    %c0_i32 = arith.constant 0 : i32
    return %arg0, %arg1 : i32, i32
  }
  func.func @transform_1(%arg0: i32, %arg1: i32) -> (i32, i32) {
    %c0_i32 = arith.constant 0 : i32
    %c0_i32_0 = arith.constant 0 : i32
    return %arg1, %c0_i32 : i32, i32
  }
  func.func @transform_2(%arg0: i32, %arg1: i32) -> (i32, i32) {
    %c0_i32 = arith.constant 0 : i32
    %c0_i32_0 = arith.constant 0 : i32
    %c0_i32_1 = arith.constant 0 : i32
    return %c0_i32, %c0_i32_0 : i32, i32
  }
  func.func @transform_3(%arg0: i32, %arg1: i32) -> (i32, i32) {
    %c0_i32 = arith.constant 0 : i32
    %c0_i32_0 = arith.constant 0 : i32
    %c0_i32_1 = arith.constant 0 : i32
    return %c0_i32, %c0_i32_0 : i32, i32
  }
  func.func @transform_4(%arg0: i32, %arg1: i32) -> (i32, i32) {
    %c0_i32 = arith.constant 0 : i32
    %c0_i32_0 = arith.constant 0 : i32
    %c0_i32_1 = arith.constant 0 : i32
    return %c0_i32, %c0_i32_0 : i32, i32
  }
  func.func @transform_5(%arg0: i32, %arg1: i32) -> (i32, i32) {
    %c0_i32 = arith.constant 0 : i32
    %c0_i32_0 = arith.constant 0 : i32
    %c0_i32_1 = arith.constant 0 : i32
    return %c0_i32, %c0_i32_0 : i32, i32
  }
  func.func @transform_6(%arg0: i32, %arg1: i32) -> (i32, i32) {
    %c0_i32 = arith.constant 0 : i32
    %c0_i32_0 = arith.constant 0 : i32
    %c0_i32_1 = arith.constant 0 : i32
    return %c0_i32, %c0_i32_0 : i32, i32
  }
  func.func @transform_7(%arg0: i32, %arg1: i32) -> (i32, i32) {
    %c0_i32 = arith.constant 0 : i32
    %c0_i32_0 = arith.constant 0 : i32
    return %arg0, %c0_i32 : i32, i32
  }
  func.func @transform_8(%arg0: i32, %arg1: i32) -> (i32, i32) {
    %c0_i32 = arith.constant 0 : i32
    %c0_i32_0 = arith.constant 0 : i32
    return %arg0, %c0_i32 : i32, i32
  }
}

</mosaic_0001>

<llo_original>
// kernel: _lambda_.1
$region0: #{_lambda_.1}
  #allocation0 [shape = 'u32[]', space=smem, size = 0x4, offset = 0x4, fixed_abs, tag = 'smem constant byte address 0x4 - core index']
  #allocation1 [shape = 'u32[144,128]{1,0:T(1,128)}', space=vmem, size = 0x12000, scoped, tag = 'internal scratch']
  #allocation2 [shape = 'f32[16,128]{1,0:T(8,128)}', space=vmem, size = 0x2000, scoped, tag = 'scratch operand']
  %s0 = inlined_call_operand.vmem [shape: bf16[16,1024], index: 0, kind: input, shape index: {}]
  %s1 = inlined_call_operand.vmem [shape: bf16[1024,128], index: 1, kind: input, shape index: {}]
  %s2 = inlined_call_operand.vmem [shape: f32[1,128], index: 2, kind: input, shape index: {}]
  %s3 = inlined_call_operand.hbm [shape: bf16[128,256], index: 3, kind: input, shape index: {}]
  %s4 = inlined_call_operand.vmem [shape: f32[1,256], index: 4, kind: input, shape index: {}]
  %s5 = inlined_call_operand.hbm [shape: bf16[256,256], index: 5, kind: input, shape index: {}]
  %s6 = inlined_call_operand.vmem [shape: f32[1,256], index: 6, kind: input, shape index: {}]
  %s7 = inlined_call_operand.vmem [shape: f32[16,128], index: 7, kind: output, shape index: {0}]
  %s8 = inlined_call_operand.vmem [shape: f32[16,128], index: 8, kind: output, shape index: {1}]
  %9 = xla_tuple %s7, %s8
  %s10 = sld [smem:[#allocation0]]
  $region108: #{_lambda_.1} parent=0
    _
  %s12 = ssub.s32 1, %s10
  %s13 = scalar_select 0, %s12, %s10
  $region1: #{_lambda_.1} parent=0
    #allocation3 [shape = 'u8[32768]{0}', space=vmem, size = 0x8000, scoped, tag = 'input window, operand 0']
    #allocation4 [shape = 'u8[65536]{0}', space=vmem, size = 0x10000, scoped, tag = 'input window, operand 3, single buffered']
    #allocation5 [shape = 's32[2]{0}', space=sflag, size = 0x8, scoped, tag = 'scoped memory for _lambda_.1']
    #allocation6 [shape = 'u8[131072]{0}', space=vmem, size = 0x20000, scoped, tag = 'input window, operand 5, single buffered']
    #allocation7 [shape = 's32[1]{0}', space=sflag, size = 0x4, scoped, tag = 'scoped memory for _lambda_.1']
    %14 = vsyncpa [#allocation5], 0
    %15 = vsyncpa [#allocation7], 0
    loop: start=0, step=1, limit=4
    $region2: #{_lambda_.1} parent=1 // loop_pre_header
      _
    $region3: #{_lambda_.1} parent=1 // loop_header
      %s17 = sphi 0, %s21
      %p18 = scmp.ge.s32.totalorder %s17, 4
      %s24 = sphi 0, %s36
      %s25 = sphi 0, %s32
      %s26 = sphi 0, %s24
      %s27 = sphi 0, %s25
      %s28 = sphi 0, %s26
      %s29 = sphi 0, %s27
      %s41 = sphi 0, %s43
      %s44 = sphi 0, %s41
      %s45 = sphi 0, %s44
      %s61 = sphi 0, %s45
      %s67 = sphi 0, %s69
      %s70 = sphi 0, %s67
      %s71 = sphi 0, %s70
      %s87 = sphi 0, %s71
      %s91 = sphi 0, %s91
      %s93 = sphi 0, %s91
      %s94 = sphi 0, %s93
      %s108 = sphi 0, %s94
      %s112 = sphi 0, %s112
      %s114 = sphi 0, %s112
      %s115 = sphi 0, %s114
      %s129 = sphi 0, %s115
      %s133 = sphi 0, %s133
      %s135 = sphi 0, %s133
      %s136 = sphi 0, %s135
      %s150 = sphi 0, %s136
      %s154 = sphi 0, %s154
      %s156 = sphi 0, %s154
      %s157 = sphi 0, %s156
      %s171 = sphi 0, %s157
      %s175 = sphi 0, %s175
      %s177 = sphi 0, %s175
      %s178 = sphi 0, %s177
      %s192 = sphi 0, %s178
      %s198 = sphi 0, %s200
      %s201 = sphi 0, %s198
      %s202 = sphi 0, %s201
      %s218 = sphi 0, %s202
      %s224 = sphi 0, %s226
      %s227 = sphi 0, %s224
      %s228 = sphi 0, %s227
      %s244 = sphi 0, %s228
    $region4: #{_lambda_.1} parent=1 // loop_header_branch
      %20 = sbr.rel (%p18) target = $region8
    $region5: #{_lambda_.1} parent=1 // loop_body
      %s22 = ssub.s32 %s17, 1
      %s23 = ssub.s32 %s17, 2
      %s30 = sadd.s32 1, %s25
      %p31 = scmp.ge.s32.totalorder %s30, 2
      %s32 = scalar_select %p31, 0, %s30
      %s33 = sadd.s32 1, %s24
      %s34 = scalar_select %p31, %s33, %s24
      %p35 = scmp.ge.s32.totalorder %s34, 1
      %s36 = scalar_select %p35, 0, %s34
      %s37 = ssub.s32 %s24, %s36
      %s38 = ssub.s32 %s25, %s32
      %s39 = sor.u32 %s37, %s38
      %p40 = scmp.eq.s32.totalorder %s39, 0
      %s42 = sadd.s32 %s41, 1
      %s43 = scalar_select %p40, %s41, %s42
      %p46 = pneg %p40
      %p47 = scmp.eq.s32.totalorder %s17, 1
      %p48 = por %p46, %p47
      %p49 = scmp.ne.s32.totalorder %s41, %s44
      %p50 = scmp.eq.s32.totalorder %s17, 0
      %p51 = por %p49, %p50
      %p52 = scmp.ne.s32.totalorder %s41, %s44
      %p53 = scmp.eq.s32.totalorder %s22, 1
      %p54 = por %p52, %p53
      %p55 = scmp.ne.s32.totalorder %s44, %s45
      %p56 = scmp.eq.s32.totalorder %s22, 0
      %p57 = por %p55, %p56
      %p58 = scmp.ne.s32.totalorder %s44, %s45
      %p59 = scmp.eq.s32.totalorder %s23, 1
      %p60 = por %p58, %p59
      %p62 = scmp.ne.s32.totalorder %s45, %s61
      %p63 = scmp.eq.s32.totalorder %s23, 0
      %p64 = por %p62, %p63
      %s65 = ssub.s32 %s25, %s32
      %p66 = scmp.eq.s32.totalorder %s65, 0
      %s68 = sadd.s32 %s67, 1
      %s69 = scalar_select %p66, %s67, %s68
      %p72 = pneg %p66
      %p73 = scmp.eq.s32.totalorder %s17, 1
      %p74 = por %p72, %p73
      %p75 = scmp.ne.s32.totalorder %s67, %s70
      %p76 = scmp.eq.s32.totalorder %s17, 0
      %p77 = por %p75, %p76
      %p78 = scmp.ne.s32.totalorder %s67, %s70
      %p79 = scmp.eq.s32.totalorder %s22, 1
      %p80 = por %p78, %p79
      %p81 = scmp.ne.s32.totalorder %s70, %s71
      %p82 = scmp.eq.s32.totalorder %s22, 0
      %p83 = por %p81, %p82
      %p84 = scmp.ne.s32.totalorder %s70, %s71
      %p85 = scmp.eq.s32.totalorder %s23, 1
      %p86 = por %p84, %p85
      %p88 = scmp.ne.s32.totalorder %s71, %s87
      %p89 = scmp.eq.s32.totalorder %s23, 0
      %p90 = por %p88, %p89
      %s92 = sadd.s32 %s91, 1
      %p95 = scmp.eq.s32.totalorder %s17, 1
      %p96 = scmp.ne.s32.totalorder %s91, %s93
      %p97 = scmp.eq.s32.totalorder %s17, 0
      %p98 = por %p96, %p97
      %p99 = scmp.ne.s32.totalorder %s91, %s93
      %p100 = scmp.eq.s32.totalorder %s22, 1
      %p101 = por %p99, %p100
      %p102 = scmp.ne.s32.totalorder %s93, %s94
      %p103 = scmp.eq.s32.totalorder %s22, 0
      %p104 = por %p102, %p103
      %p105 = scmp.ne.s32.totalorder %s93, %s94
      %p106 = scmp.eq.s32.totalorder %s23, 1
      %p107 = por %p105, %p106
      %p109 = scmp.ne.s32.totalorder %s94, %s108
      %p110 = scmp.eq.s32.totalorder %s23, 0
      %p111 = por %p109, %p110
      %s113 = sadd.s32 %s112, 1
      %p116 = scmp.eq.s32.totalorder %s17, 1
      %p117 = scmp.ne.s32.totalorder %s112, %s114
      %p118 = scmp.eq.s32.totalorder %s17, 0
      %p119 = por %p117, %p118
      %p120 = scmp.ne.s32.totalorder %s112, %s114
      %p121 = scmp.eq.s32.totalorder %s22, 1
      %p122 = por %p120, %p121
      %p123 = scmp.ne.s32.totalorder %s114, %s115
      %p124 = scmp.eq.s32.totalorder %s22, 0
      %p125 = por %p123, %p124
      %p126 = scmp.ne.s32.totalorder %s114, %s115
      %p127 = scmp.eq.s32.totalorder %s23, 1
      %p128 = por %p126, %p127
      %p130 = scmp.ne.s32.totalorder %s115, %s129
      %p131 = scmp.eq.s32.totalorder %s23, 0
      %p132 = por %p130, %p131
      %s134 = sadd.s32 %s133, 1
      %p137 = scmp.eq.s32.totalorder %s17, 1
      %p138 = scmp.ne.s32.totalorder %s133, %s135
      %p139 = scmp.eq.s32.totalorder %s17, 0
      %p140 = por %p138, %p139
      %p141 = scmp.ne.s32.totalorder %s133, %s135
      %p142 = scmp.eq.s32.totalorder %s22, 1
      %p143 = por %p141, %p142
      %p144 = scmp.ne.s32.totalorder %s135, %s136
      %p145 = scmp.eq.s32.totalorder %s22, 0
      %p146 = por %p144, %p145
      %p147 = scmp.ne.s32.totalorder %s135, %s136
      %p148 = scmp.eq.s32.totalorder %s23, 1
      %p149 = por %p147, %p148
      %p151 = scmp.ne.s32.totalorder %s136, %s150
      %p152 = scmp.eq.s32.totalorder %s23, 0
      %p153 = por %p151, %p152
      %s155 = sadd.s32 %s154, 1
      %p158 = scmp.eq.s32.totalorder %s17, 1
      %p159 = scmp.ne.s32.totalorder %s154, %s156
      %p160 = scmp.eq.s32.totalorder %s17, 0
      %p161 = por %p159, %p160
      %p162 = scmp.ne.s32.totalorder %s154, %s156
      %p163 = scmp.eq.s32.totalorder %s22, 1
      %p164 = por %p162, %p163
      %p165 = scmp.ne.s32.totalorder %s156, %s157
      %p166 = scmp.eq.s32.totalorder %s22, 0
      %p167 = por %p165, %p166
      %p168 = scmp.ne.s32.totalorder %s156, %s157
      %p169 = scmp.eq.s32.totalorder %s23, 1
      %p170 = por %p168, %p169
      %p172 = scmp.ne.s32.totalorder %s157, %s171
      %p173 = scmp.eq.s32.totalorder %s23, 0
      %p174 = por %p172, %p173
      %s176 = sadd.s32 %s175, 1
      %p179 = scmp.eq.s32.totalorder %s17, 1
      %p180 = scmp.ne.s32.totalorder %s175, %s177
      %p181 = scmp.eq.s32.totalorder %s17, 0
      %p182 = por %p180, %p181
      %p183 = scmp.ne.s32.totalorder %s175, %s177
      %p184 = scmp.eq.s32.totalorder %s22, 1
      %p185 = por %p183, %p184
      %p186 = scmp.ne.s32.totalorder %s177, %s178
      %p187 = scmp.eq.s32.totalorder %s22, 0
      %p188 = por %p186, %p187
      %p189 = scmp.ne.s32.totalorder %s177, %s178
      %p190 = scmp.eq.s32.totalorder %s23, 1
      %p191 = por %p189, %p190
      %p193 = scmp.ne.s32.totalorder %s178, %s192
      %p194 = scmp.eq.s32.totalorder %s23, 0
      %p195 = por %p193, %p194
      %s196 = ssub.s32 %s24, %s36
      %p197 = scmp.eq.s32.totalorder %s196, 0
      %s199 = sadd.s32 %s198, 1
      %s200 = scalar_select %p197, %s198, %s199
      %p203 = pneg %p197
      %p204 = scmp.eq.s32.totalorder %s17, 1
      %p205 = por %p203, %p204
      %p206 = scmp.ne.s32.totalorder %s198, %s201
      %p207 = scmp.eq.s32.totalorder %s17, 0
      %p208 = por %p206, %p207
      %p209 = scmp.ne.s32.totalorder %s198, %s201
      %p210 = scmp.eq.s32.totalorder %s22, 1
      %p211 = por %p209, %p210
      %p212 = scmp.ne.s32.totalorder %s201, %s202
      %p213 = scmp.eq.s32.totalorder %s22, 0
      %p214 = por %p212, %p213
      %p215 = scmp.ne.s32.totalorder %s201, %s202
      %p216 = scmp.eq.s32.totalorder %s23, 1
      %p217 = por %p215, %p216
      %p219 = scmp.ne.s32.totalorder %s202, %s218
      %p220 = scmp.eq.s32.totalorder %s23, 0
      %p221 = por %p219, %p220
      %s222 = ssub.s32 %s24, %s36
      %p223 = scmp.eq.s32.totalorder %s222, 0
      %s225 = sadd.s32 %s224, 1
      %s226 = scalar_select %p223, %s224, %s225
      %p229 = pneg %p223
      %p230 = scmp.eq.s32.totalorder %s17, 1
      %p231 = por %p229, %p230
      %p232 = scmp.ne.s32.totalorder %s224, %s227
      %p233 = scmp.eq.s32.totalorder %s17, 0
      %p234 = por %p232, %p233
      %p235 = scmp.ne.s32.totalorder %s224, %s227
      %p236 = scmp.eq.s32.totalorder %s22, 1
      %p237 = por %p235, %p236
      %p238 = scmp.ne.s32.totalorder %s227, %s228
      %p239 = scmp.eq.s32.totalorder %s22, 0
      %p240 = por %p238, %p239
      %p241 = scmp.ne.s32.totalorder %s227, %s228
      %p242 = scmp.eq.s32.totalorder %s23, 1
      %p243 = por %p241, %p242
      %p245 = scmp.ne.s32.totalorder %s228, %s244
      %p246 = scmp.eq.s32.totalorder %s23, 0
      %p247 = por %p245, %p246
      %p248 = scmp.le.s32.totalorder 1, %s17
      %p249 = scmp.lt.s32.totalorder %s17, 3
      %p250 = pnand %p248, %p249
      %p251 = pneg %p250
      // Predicated region
      $region9: #{_lambda_.1} parent=5 // pred_check
        _
      $region10: #{_lambda_.1} parent=5 // pred_check_branch
        %253 = sbr.rel (%p250) target = $region12
      $region11: #{_lambda_.1} parent=5 // pred_region
        %s254 = ssub.s32 %s17, 1
        // Predicated region
        $region13: #{_lambda_.1} parent=11 // pred_check
          %p255 = pneg %p104
        $region14: #{_lambda_.1} parent=11 // pred_check_branch
          %257 = sbr.rel (%p255) target = $region16
        $region15: #{_lambda_.1} parent=11 // pred_region
          _
        $region16: #{_lambda_.1} parent=11 // pred_fallthru
          _
        // Predicated region
        $region17: #{_lambda_.1} parent=11 // pred_check
          %p258 = pneg %p125
        $region18: #{_lambda_.1} parent=11 // pred_check_branch
          %260 = sbr.rel (%p258) target = $region20
        $region19: #{_lambda_.1} parent=11 // pred_region
          %s262 = ssub.s32 2048, 2048
          %263 = vsyncadd [#allocation5], %s262
          %s264 = sshll.u32 [#allocation4], 4
          %s265 = int_to_ptr.vmem [resolvable:$true] %s264
          %270 = dma.hbm_to_vmem [thread:$0]  %s3, 2048, %s265, [#allocation5], 128, 128, 8
        $region20: #{_lambda_.1} parent=11 // pred_fallthru
          _
        // Predicated region
        $region21: #{_lambda_.1} parent=11 // pred_check
          %p271 = pneg %p146
        $region22: #{_lambda_.1} parent=11 // pred_check_branch
          %273 = sbr.rel (%p271) target = $region24
        $region23: #{_lambda_.1} parent=11 // pred_region
          _
        $region24: #{_lambda_.1} parent=11 // pred_fallthru
          _
        // Predicated region
        $region25: #{_lambda_.1} parent=11 // pred_check
          %p274 = pneg %p167
        $region26: #{_lambda_.1} parent=11 // pred_check_branch
          %276 = sbr.rel (%p274) target = $region28
        $region27: #{_lambda_.1} parent=11 // pred_region
          %s278 = ssub.s32 4096, 4096
          %279 = vsyncadd [#allocation7], %s278
          %s280 = sshll.u32 [#allocation6], 4
          %s281 = int_to_ptr.vmem [resolvable:$true] %s280
          %286 = dma.hbm_to_vmem [thread:$0]  %s5, 4096, %s281, [#allocation7], 128, 128, 8
        $region28: #{_lambda_.1} parent=11 // pred_fallthru
          _
        // Predicated region
        $region29: #{_lambda_.1} parent=11 // pred_check
          %p287 = pneg %p188
        $region30: #{_lambda_.1} parent=11 // pred_check_branch
          %289 = sbr.rel (%p287) target = $region32
        $region31: #{_lambda_.1} parent=11 // pred_region
          _
        $region32: #{_lambda_.1} parent=11 // pred_fallthru
          _
      $region12: #{_lambda_.1} parent=5 // pred_fallthru
        _
      %p290 = scmp.lt.s32.totalorder %s17, 2
      // Predicated region
      $region33: #{_lambda_.1} parent=5 // pred_check
        %p291 = pneg %p290
      $region34: #{_lambda_.1} parent=5 // pred_check_branch
        %293 = sbr.rel (%p291) target = $region36
      $region35: #{_lambda_.1} parent=5 // pred_region
        // Predicated region
        $region37: #{_lambda_.1} parent=35 // pred_check
          %p294 = pneg %p51
        $region38: #{_lambda_.1} parent=35 // pred_check_branch
          %296 = sbr.rel (%p294) target = $region40
        $region39: #{_lambda_.1} parent=35 // pred_region
          %s297 = sand.u32 %s41, 1
          %s298 = sand.u32 %s41, 1
          %s299 = smul.addr %s298, 32
          %s300 = scalar_lea.vmem [#allocation3], %s299
          %s301 = smul.u32 2, %s24
          %s302 = smul.u32 4, %s25
          %s303 = smul.addr %s301, 8
          %s304 = sadd.s32 %s302, %s303
          %s305 = smul.addr %s304, 4
          %s306 = scalar_lea.vmem %s0, %s305
          // Predicated region
          $region41: #{_lambda_.1} parent=39 // pred_check
            _
          $region42: #{_lambda_.1} parent=39 // pred_check_branch
            %308 = sbr.rel (0) target = $region44
          $region43: #{_lambda_.1} parent=39 // pred_region
            // Predicated region
            $region45: #{_lambda_.1} parent=43 // pred_check
              _
            $region46: #{_lambda_.1} parent=43 // pred_check_branch
              %310 = sbr.rel (0) target = $region48
            $region47: #{_lambda_.1} parent=43 // pred_region
              loop: start=0, step=1, limit=1
              $region49: #{_lambda_.1} parent=47 // loop_pre_header
                _
              $region50: #{_lambda_.1} parent=47 // loop_header
                %s312 = sphi 0, %s316
                %p313 = scmp.ge.s32.totalorder %s312, 1
                %s317 = sphi %s306, %s306
                %s318 = sphi %s300, %s300
              $region51: #{_lambda_.1} parent=47 // loop_header_branch
                %315 = sbr.rel (%p313) target = $region55
              $region52: #{_lambda_.1} parent=47 // loop_body
                %v319 = vld [vmem:[%s317] sm:$0xff]
                %320 = vst [vmem:[%s318] sm:$0xff] %v319
                %v321 = vld [vmem:[%s317 + $0x8] sm:$0xff]
                %322 = vst [vmem:[%s318 + $0x8] sm:$0xff] %v321
                %v323 = vld [vmem:[%s317 + $0x20] sm:$0xff]
                %324 = vst [vmem:[%s318 + $0x10] sm:$0xff] %v323
                %v325 = vld [vmem:[%s317 + $0x28] sm:$0xff]
                %326 = vst [vmem:[%s318 + $0x18] sm:$0xff] %v325
              $region53: #{_lambda_.1} parent=47 // loop_footer
                %s316 = sadd.s32 1, %s312
              $region54: #{_lambda_.1} parent=47 // loop_footer_branch
                %311 = sbr.rel target = $region50
              $region55: #{_lambda_.1} parent=47 // loop_exit
                _
            $region48: #{_lambda_.1} parent=43 // pred_fallthru
              _
            // Predicated region
            $region56: #{_lambda_.1} parent=43 // pred_check
              _
            $region57: #{_lambda_.1} parent=43 // pred_check_branch
              %328 = sbr.rel target = $region59
            $region58: #{_lambda_.1} parent=43 // pred_region
              _
            $region59: #{_lambda_.1} parent=43 // pred_fallthru
              _
          $region44: #{_lambda_.1} parent=39 // pred_fallthru
            _
          %329 = vnop
        $region40: #{_lambda_.1} parent=35 // pred_fallthru
          _
        // Predicated region
        $region60: #{_lambda_.1} parent=35 // pred_check
          %p330 = pneg %p77
        $region61: #{_lambda_.1} parent=35 // pred_check_branch
          %332 = sbr.rel (%p330) target = $region63
        $region62: #{_lambda_.1} parent=35 // pred_region
          %s333 = smul.u32 64, %s25
          %p334 = scmp.lt.s32.totalorder %s333, 127
          %s335 = scalar_select %p334, %s333, 127
          %s336 = smul.addr %s335, 4
          %s337 = scalar_lea.vmem %s1, %s336
          %s338 = smul.u32 64, %s25
        $region63: #{_lambda_.1} parent=35 // pred_fallthru
          _
      $region36: #{_lambda_.1} parent=5 // pred_fallthru
        _
      %p339 = scmp.le.s32.totalorder 1, %s17
      %p340 = scmp.lt.s32.totalorder %s17, 3
      %p341 = pnand %p339, %p340
      %p342 = pneg %p341
      // Predicated region
      $region64: #{_lambda_.1} parent=5 // pred_check
        _
      $region65: #{_lambda_.1} parent=5 // pred_check_branch
        %344 = sbr.rel (%p341) target = $region67
      $region66: #{_lambda_.1} parent=5 // pred_region
        %s345 = ssub.s32 %s17, 1
        %s346 = sand.u32 %s44, 1
        %s347 = sand.u32 %s44, 1
        %s348 = smul.addr %s347, 32
        %s349 = scalar_lea.vmem [#allocation3], %s348
        // Predicated region
        $region68: #{_lambda_.1} parent=66 // pred_check
          %p350 = pneg %p57
        $region69: #{_lambda_.1} parent=66 // pred_check_branch
          %352 = sbr.rel (%p350) target = $region71
        $region70: #{_lambda_.1} parent=66 // pred_region
          _
        $region71: #{_lambda_.1} parent=66 // pred_fallthru
          _
        // Predicated region
        $region72: #{_lambda_.1} parent=66 // pred_check
          %p353 = pneg %p125
        $region73: #{_lambda_.1} parent=66 // pred_check_branch
          %355 = sbr.rel (%p353) target = $region75
        $region74: #{_lambda_.1} parent=66 // pred_region
          %356 = dma.done [#allocation5], 2048
        $region75: #{_lambda_.1} parent=66 // pred_fallthru
          _
        // Predicated region
        $region76: #{_lambda_.1} parent=66 // pred_check
          %p357 = pneg %p167
        $region77: #{_lambda_.1} parent=66 // pred_check_branch
          %359 = sbr.rel (%p357) target = $region79
        $region78: #{_lambda_.1} parent=66 // pred_region
          %360 = dma.done [#allocation7], 4096
        $region79: #{_lambda_.1} parent=66 // pred_fallthru
          _
        %s361 = sand.u32 %s44, 1
        %s362 = sand.u32 %s44, 1
        %s363 = smul.addr %s362, 32
        %s364 = scalar_lea.vmem [#allocation3], %s363
        %p365 = pneg %p57
        %p366 = pneg %p54
        %s367 = smul.u32 64, %s27
        %p368 = scmp.lt.s32.totalorder %s367, 127
        %s369 = scalar_select %p368, %s367, 127
        %s370 = smul.addr %s369, 4
        %s371 = scalar_lea.vmem %s1, %s370
        %p372 = pneg %p83
        %p373 = pneg %p80
        %p374 = pneg %p104
        %p375 = pneg %p101
        %p376 = pneg %p125
        %p377 = pneg %p122
        %p378 = pneg %p146
        %p379 = pneg %p143
        %p380 = pneg %p167
        %p381 = pneg %p164
        %p382 = pneg %p188
        %p383 = pneg %p185
        %p384 = pneg %p214
        %p385 = pneg %p211
        %s386 = smul.u32 2, %s26
        %p387 = scmp.lt.s32.totalorder %s386, 1
        %s388 = scalar_select %p387, %s386, 1
        %s389 = smul.addr %s388, 8
        %s390 = scalar_lea.vmem %s7, %s389
        %p391 = pneg %p240
        %p392 = pneg %p237
        %s393 = smul.u32 2, %s26
        %p394 = scmp.lt.s32.totalorder %s393, 1
        %s395 = scalar_select %p394, %s393, 1
        %s396 = smul.addr %s395, 8
        %s397 = scalar_lea.vmem %s8, %s396
        %s398 = smul.u32 2, %s26
        %s399 = smul.u32 4, %s27
        %s400 = smul.u32 64, %s27
        %p401 = scmp.lt.s32.totalorder %s400, 127
        %s402 = scalar_select %p401, %s400, 127
        %s403 = smul.addr %s402, 4
        %s404 = scalar_lea.vmem %s1, %s403
        %s405 = smul.u32 64, %s27
        %s406 = smul.u32 2, %s26
        %p407 = scmp.lt.s32.totalorder %s406, 1
        %s408 = scalar_select %p407, %s406, 1
        %s409 = smul.addr %s408, 8
        %s410 = scalar_lea.vmem %s7, %s409
        %s411 = smul.u32 2, %s26
        %s412 = smul.u32 2, %s26
        %p413 = scmp.lt.s32.totalorder %s412, 1
        %s414 = scalar_select %p413, %s412, 1
        %s415 = smul.addr %s414, 8
        %s416 = scalar_lea.vmem %s8, %s415
        %s417 = smul.u32 2, %s26
        %p419 = scmp.eq.s32.totalorder %s27, 0
        // Predicated region
        $region80: #{_lambda_.1} parent=66 // pred_check
          %p420 = pneg %p419
        $region81: #{_lambda_.1} parent=66 // pred_check_branch
          %422 = sbr.rel (%p420) target = $region83
        $region82: #{_lambda_.1} parent=66 // pred_region
          %423 = vst [vmem:[#allocation2] sm:$0xff] 0.0
          %424 = vst [vmem:[#allocation2 + $0x8] sm:$0xff] 0.0
        $region83: #{_lambda_.1} parent=66 // pred_fallthru
          _
        %v425 = vld [vmem:[#allocation2] sm:$0xff]
        %v426 = vld [vmem:[#allocation2 + $0x8] sm:$0xff]
        %v427 = vld [vmem:[%s349] sm:$0xff]
        %v428 = vld [vmem:[%s349 + $0x8] sm:$0xff]
        %v429 = vld [vmem:[%s349 + $0x10] sm:$0xff]
        %v430 = vld [vmem:[%s349 + $0x18] sm:$0xff]
        %v431 = vld [vmem:[%s404] sm:$0xf]
        %v432 = vld [vmem:[%s404 + $0x4] sm:$0xf]
        %v433 = vld [vmem:[%s404 + $0x8] sm:$0xf]
        %v434 = vld [vmem:[%s404 + $0xc] sm:$0xf]
        %v435 = vld [vmem:[%s404 + $0x10] sm:$0xf]
        %v436 = vld [vmem:[%s404 + $0x14] sm:$0xf]
        %v437 = vld [vmem:[%s404 + $0x18] sm:$0xf]
        %v438 = vld [vmem:[%s404 + $0x1c] sm:$0xf]
        %v439 = vld [vmem:[%s404 + $0x20] sm:$0xf]
        %v440 = vld [vmem:[%s404 + $0x24] sm:$0xf]
        %v441 = vld [vmem:[%s404 + $0x28] sm:$0xf]
        %v442 = vld [vmem:[%s404 + $0x2c] sm:$0xf]
        %v443 = vld [vmem:[%s404 + $0x30] sm:$0xf]
        %v444 = vld [vmem:[%s404 + $0x34] sm:$0xf]
        %v445 = vld [vmem:[%s404 + $0x38] sm:$0xf]
        %v446 = vld [vmem:[%s404 + $0x3c] sm:$0xf]
        %v447 = vld [vmem:[%s404 + $0x40] sm:$0xf]
        %v448 = vld [vmem:[%s404 + $0x44] sm:$0xf]
        %v449 = vld [vmem:[%s404 + $0x48] sm:$0xf]
        %v450 = vld [vmem:[%s404 + $0x4c] sm:$0xf]
        %v451 = vld [vmem:[%s404 + $0x50] sm:$0xf]
        %v452 = vld [vmem:[%s404 + $0x54] sm:$0xf]
        %v453 = vld [vmem:[%s404 + $0x58] sm:$0xf]
        %v454 = vld [vmem:[%s404 + $0x5c] sm:$0xf]
        %v455 = vld [vmem:[%s404 + $0x60] sm:$0xf]
        %v456 = vld [vmem:[%s404 + $0x64] sm:$0xf]
        %v457 = vld [vmem:[%s404 + $0x68] sm:$0xf]
        %v458 = vld [vmem:[%s404 + $0x6c] sm:$0xf]
        %v459 = vld [vmem:[%s404 + $0x70] sm:$0xf]
        %v460 = vld [vmem:[%s404 + $0x74] sm:$0xf]
        %v461 = vld [vmem:[%s404 + $0x78] sm:$0xf]
        %v462 = vld [vmem:[%s404 + $0x7c] sm:$0xf]
        %v463 = vld [vmem:[%s404 + $0x80] sm:$0xf]
        %v464 = vld [vmem:[%s404 + $0x84] sm:$0xf]
        %v465 = vld [vmem:[%s404 + $0x88] sm:$0xf]
        %v466 = vld [vmem:[%s404 + $0x8c] sm:$0xf]
        %v467 = vld [vmem:[%s404 + $0x90] sm:$0xf]
        %v468 = vld [vmem:[%s404 + $0x94] sm:$0xf]
        %v469 = vld [vmem:[%s404 + $0x98] sm:$0xf]
        %v470 = vld [vmem:[%s404 + $0x9c] sm:$0xf]
        %v471 = vld [vmem:[%s404 + $0xa0] sm:$0xf]
        %v472 = vld [vmem:[%s404 + $0xa4] sm:$0xf]
        %v473 = vld [vmem:[%s404 + $0xa8] sm:$0xf]
        %v474 = vld [vmem:[%s404 + $0xac] sm:$0xf]
        %v475 = vld [vmem:[%s404 + $0xb0] sm:$0xf]
        %v476 = vld [vmem:[%s404 + $0xb4] sm:$0xf]
        %v477 = vld [vmem:[%s404 + $0xb8] sm:$0xf]
        %v478 = vld [vmem:[%s404 + $0xbc] sm:$0xf]
        %v479 = vld [vmem:[%s404 + $0xc0] sm:$0xf]
        %v480 = vld [vmem:[%s404 + $0xc4] sm:$0xf]
        %v481 = vld [vmem:[%s404 + $0xc8] sm:$0xf]
        %v482 = vld [vmem:[%s404 + $0xcc] sm:$0xf]
        %v483 = vld [vmem:[%s404 + $0xd0] sm:$0xf]
        %v484 = vld [vmem:[%s404 + $0xd4] sm:$0xf]
        %v485 = vld [vmem:[%s404 + $0xd8] sm:$0xf]
        %v486 = vld [vmem:[%s404 + $0xdc] sm:$0xf]
        %v487 = vld [vmem:[%s404 + $0xe0] sm:$0xf]
        %v488 = vld [vmem:[%s404 + $0xe4] sm:$0xf]
        %v489 = vld [vmem:[%s404 + $0xe8] sm:$0xf]
        %v490 = vld [vmem:[%s404 + $0xec] sm:$0xf]
        %v491 = vld [vmem:[%s404 + $0xf0] sm:$0xf]
        %v492 = vld [vmem:[%s404 + $0xf4] sm:$0xf]
        %v493 = vld [vmem:[%s404 + $0xf8] sm:$0xf]
        %v494 = vld [vmem:[%s404 + $0xfc] sm:$0xf]
        %v499 = vunpack.c.l.b16 %v427
        %v500 = vunpack.c.h.b16 %v427
        %v501 = vunpack.c.l.b16 %v428
        %v502 = vunpack.c.h.b16 %v428
        %v503 = vunpack.c.l.b16 %v429
        %v504 = vunpack.c.h.b16 %v429
        %v505 = vunpack.c.l.b16 %v430
        %v506 = vunpack.c.h.b16 %v430
        %v507 = vpack.c.b16 %v503, %v499
        %v508 = vpack.c.b16 %v504, %v500
        %v509 = vpack.c.b16 %v505, %v501
        %v510 = vpack.c.b16 %v506, %v502
        %v579 = vunpack.c.l.b16 %v431
        %v580 = vunpack.c.l.b16 %v432
        %v581 = vunpack.c.l.b16 %v433
        %v582 = vunpack.c.l.b16 %v434
        %v583 = vunpack.c.l.b16 %v435
        %v584 = vunpack.c.l.b16 %v436
        %v585 = vunpack.c.l.b16 %v437
        %v586 = vunpack.c.l.b16 %v438
        %v587 = vunpack.c.l.b16 %v439
        %v588 = vunpack.c.l.b16 %v440
        %v589 = vunpack.c.l.b16 %v441
        %v590 = vunpack.c.l.b16 %v442
        %v591 = vunpack.c.l.b16 %v443
        %v592 = vunpack.c.l.b16 %v444
        %v593 = vunpack.c.l.b16 %v445
        %v594 = vunpack.c.l.b16 %v446
        %v595 = vunpack.c.l.b16 %v447
        %v596 = vunpack.c.l.b16 %v448
        %v597 = vunpack.c.l.b16 %v449
        %v598 = vunpack.c.l.b16 %v450
        %v599 = vunpack.c.l.b16 %v451
        %v600 = vunpack.c.l.b16 %v452
        %v601 = vunpack.c.l.b16 %v453
        %v602 = vunpack.c.l.b16 %v454
        %v603 = vunpack.c.l.b16 %v455
        %v604 = vunpack.c.l.b16 %v456
        %v605 = vunpack.c.l.b16 %v457
        %v606 = vunpack.c.l.b16 %v458
        %v607 = vunpack.c.l.b16 %v459
        %v608 = vunpack.c.l.b16 %v460
        %v609 = vunpack.c.l.b16 %v461
        %v610 = vunpack.c.l.b16 %v462
        %v611 = vunpack.c.l.b16 %v463
        %v612 = vunpack.c.l.b16 %v464
        %v613 = vunpack.c.l.b16 %v465
        %v614 = vunpack.c.l.b16 %v466
        %v615 = vunpack.c.l.b16 %v467
        %v616 = vunpack.c.l.b16 %v468
        %v617 = vunpack.c.l.b16 %v469
        %v618 = vunpack.c.l.b16 %v470
        %v619 = vunpack.c.l.b16 %v471
        %v620 = vunpack.c.l.b16 %v472
        %v621 = vunpack.c.l.b16 %v473
        %v622 = vunpack.c.l.b16 %v474
        %v623 = vunpack.c.l.b16 %v475
        %v624 = vunpack.c.l.b16 %v476
        %v625 = vunpack.c.l.b16 %v477
        %v626 = vunpack.c.l.b16 %v478
        %v627 = vunpack.c.l.b16 %v479
        %v628 = vunpack.c.l.b16 %v480
        %v629 = vunpack.c.l.b16 %v481
        %v630 = vunpack.c.l.b16 %v482
        %v631 = vunpack.c.l.b16 %v483
        %v632 = vunpack.c.l.b16 %v484
        %v633 = vunpack.c.l.b16 %v485
        %v634 = vunpack.c.l.b16 %v486
        %v635 = vunpack.c.l.b16 %v487
        %v636 = vunpack.c.l.b16 %v488
        %v637 = vunpack.c.l.b16 %v489
        %v638 = vunpack.c.l.b16 %v490
        %v639 = vunpack.c.l.b16 %v491
        %v640 = vunpack.c.l.b16 %v492
        %v641 = vunpack.c.l.b16 %v493
        %v642 = vunpack.c.l.b16 %v494
        %v643 = vpack.c.b16 %v580, %v579
        %v644 = vpack.c.b16 %v582, %v581
        %v645 = vpack.c.b16 %v584, %v583
        %v646 = vpack.c.b16 %v586, %v585
        %v647 = vpack.c.b16 %v588, %v587
        %v648 = vpack.c.b16 %v590, %v589
        %v649 = vpack.c.b16 %v592, %v591
        %v650 = vpack.c.b16 %v594, %v593
        %v651 = vpack.c.b16 %v596, %v595
        %v652 = vpack.c.b16 %v598, %v597
        %v653 = vpack.c.b16 %v600, %v599
        %v654 = vpack.c.b16 %v602, %v601
        %v655 = vpack.c.b16 %v604, %v603
        %v656 = vpack.c.b16 %v606, %v605
        %v657 = vpack.c.b16 %v608, %v607
        %v658 = vpack.c.b16 %v610, %v609
        %v659 = vpack.c.b16 %v612, %v611
        %v660 = vpack.c.b16 %v614, %v613
        %v661 = vpack.c.b16 %v616, %v615
        %v662 = vpack.c.b16 %v618, %v617
        %v663 = vpack.c.b16 %v620, %v619
        %v664 = vpack.c.b16 %v622, %v621
        %v665 = vpack.c.b16 %v624, %v623
        %v666 = vpack.c.b16 %v626, %v625
        %v667 = vpack.c.b16 %v628, %v627
        %v668 = vpack.c.b16 %v630, %v629
        %v669 = vpack.c.b16 %v632, %v631
        %v670 = vpack.c.b16 %v634, %v633
        %v671 = vpack.c.b16 %v636, %v635
        %v672 = vpack.c.b16 %v638, %v637
        %v673 = vpack.c.b16 %v640, %v639
        %v674 = vpack.c.b16 %v642, %v641
        %707 = vmatprep.subr.bf16.mxu0 0
        %708 = vmatpush1.bf16.msra.mxu0 %v643
        %709 = vmatprep.subr.bf16.mxu0 0
        %710 = vmatpush1.bf16.msra.mxu0 %v644
        %711 = vmatprep.subr.bf16.mxu0 0
        %712 = vmatpush1.bf16.msra.mxu0 %v645
        %713 = vmatprep.subr.bf16.mxu0 0
        %714 = vmatpush1.bf16.msra.mxu0 %v646
        %715 = vmatprep.subr.bf16.mxu0 0
        %716 = vmatpush1.bf16.msra.mxu0 %v647
        %717 = vmatprep.subr.bf16.mxu0 0
        %718 = vmatpush1.bf16.msra.mxu0 %v648
        %719 = vmatprep.subr.bf16.mxu0 0
        %720 = vmatpush1.bf16.msra.mxu0 %v649
        %721 = vmatprep.subr.bf16.mxu0 0
        %722 = vmatpush1.bf16.msra.mxu0 %v650
        %723 = vmatprep.subr.bf16.mxu0 0
        %724 = vmatpush1.bf16.msra.mxu0 %v651
        %725 = vmatprep.subr.bf16.mxu0 0
        %726 = vmatpush1.bf16.msra.mxu0 %v652
        %727 = vmatprep.subr.bf16.mxu0 0
        %728 = vmatpush1.bf16.msra.mxu0 %v653
        %729 = vmatprep.subr.bf16.mxu0 0
        %730 = vmatpush1.bf16.msra.mxu0 %v654
        %731 = vmatprep.subr.bf16.mxu0 0
        %732 = vmatpush1.bf16.msra.mxu0 %v655
        %733 = vmatprep.subr.bf16.mxu0 0
        %734 = vmatpush1.bf16.msra.mxu0 %v656
        %735 = vmatprep.subr.bf16.mxu0 0
        %736 = vmatpush1.bf16.msra.mxu0 %v657
        %737 = vmatprep.subr.bf16.mxu0 0
        %738 = vmatpush1.bf16.msra.mxu0 %v658
        %739 = vmatprep.mubr.bf16.mxu0 %v508
        %740 = vmatmul.mubr.bf16.gmra.mrb[0].mxu0 %v507
        %v741 = vpop.f32.mrb[0].mxu0
        %v742 = vadd.f32 0.0, %v741
        %v743 = vpop.f32.mrb[0].mxu0
        %v744 = vpop.f32.mrb[0].mxu0
        %v745 = vadd.f32 0.0, %v744
        %v746 = vpop.f32.mrb[0].mxu0
        %747 = vdwg.mxu0
        %748 = vmatprep.subr.bf16.mxu0 0
        %749 = vmatpush1.bf16.msra.mxu0 %v659
        %750 = vmatprep.subr.bf16.mxu0 0
        %751 = vmatpush1.bf16.msra.mxu0 %v660
        %752 = vmatprep.subr.bf16.mxu0 0
        %753 = vmatpush1.bf16.msra.mxu0 %v661
        %754 = vmatprep.subr.bf16.mxu0 0
        %755 = vmatpush1.bf16.msra.mxu0 %v662
        %756 = vmatprep.subr.bf16.mxu0 0
        %757 = vmatpush1.bf16.msra.mxu0 %v663
        %758 = vmatprep.subr.bf16.mxu0 0
        %759 = vmatpush1.bf16.msra.mxu0 %v664
        %760 = vmatprep.subr.bf16.mxu0 0
        %761 = vmatpush1.bf16.msra.mxu0 %v665
        %762 = vmatprep.subr.bf16.mxu0 0
        %763 = vmatpush1.bf16.msra.mxu0 %v666
        %764 = vmatprep.subr.bf16.mxu0 0
        %765 = vmatpush1.bf16.msra.mxu0 %v667
        %766 = vmatprep.subr.bf16.mxu0 0
        %767 = vmatpush1.bf16.msra.mxu0 %v668
        %768 = vmatprep.subr.bf16.mxu0 0
        %769 = vmatpush1.bf16.msra.mxu0 %v669
        %770 = vmatprep.subr.bf16.mxu0 0
        %771 = vmatpush1.bf16.msra.mxu0 %v670
        %772 = vmatprep.subr.bf16.mxu0 0
        %773 = vmatpush1.bf16.msra.mxu0 %v671
        %774 = vmatprep.subr.bf16.mxu0 0
        %775 = vmatpush1.bf16.msra.mxu0 %v672
        %776 = vmatprep.subr.bf16.mxu0 0
        %777 = vmatpush1.bf16.msra.mxu0 %v673
        %778 = vmatprep.subr.bf16.mxu0 0
        %779 = vmatpush1.bf16.msra.mxu0 %v674
        %780 = vmatprep.mubr.bf16.mxu0 %v510
        %781 = vmatmul.mubr.bf16.gmra.mrb[0].mxu0 %v509
        %v782 = vpop.f32.mrb[0].mxu0
        %v783 = vadd.f32 %v742, %v782
        %v784 = vpop.f32.mrb[0].mxu0
        %v785 = vpop.f32.mrb[0].mxu0
        %v786 = vadd.f32 %v745, %v785
        %v787 = vpop.f32.mrb[0].mxu0
        %788 = vdwg.mxu0
        %v789 = vadd.f32 %v425, %v783
        %v790 = vadd.f32 %v426, %v786
        %791 = vst [vmem:[#allocation2] sm:$0xff] %v789
        %792 = vst [vmem:[#allocation2 + $0x8] sm:$0xff] %v790
        %p793 = scmp.eq.s32.totalorder %s27, 1
        // Predicated region
        $region84: #{_lambda_.1} parent=66 // pred_check
          %p794 = pneg %p793
        $region85: #{_lambda_.1} parent=66 // pred_check_branch
          %796 = sbr.rel (%p794) target = $region87
        $region86: #{_lambda_.1} parent=66 // pred_region
          %v797 = vld [vmem:[#allocation2] sm:$0xff]
          %v798 = vld [vmem:[#allocation2 + $0x8] sm:$0xff]
          %v799 = vld [vmem:[%s2] sm:$0x1]
          %v801 = vlaneseq
          %v802 = vshrl.u32 %v801, 7
          %v803 = vsub.s32 0, %v802
          %v804 = vrot.slane %v799, %v803
          %v806 = vadd.f32 %v797, %v804
          %v807 = vadd.f32 %v798, %v804
          %v808 = vmax.f32 %v806, 0.0
          %v809 = vmax.f32 %v807, 0.0
          %v810 = vpack.c.bf16 %v809, %v808
          %v811 = vld [vmem:[#allocation4] sm:$0xff]
          %v812 = vld [vmem:[#allocation4 + $0x8] sm:$0xff]
          %v813 = vld [vmem:[#allocation4 + $0x10] sm:$0xff]
          %v814 = vld [vmem:[#allocation4 + $0x18] sm:$0xff]
          %v815 = vld [vmem:[#allocation4 + $0x20] sm:$0xff]
          %v816 = vld [vmem:[#allocation4 + $0x28] sm:$0xff]
          %v817 = vld [vmem:[#allocation4 + $0x30] sm:$0xff]
          %v818 = vld [vmem:[#allocation4 + $0x38] sm:$0xff]
          %v819 = vld [vmem:[#allocation4 + $0x40] sm:$0xff]
          %v820 = vld [vmem:[#allocation4 + $0x48] sm:$0xff]
          %v821 = vld [vmem:[#allocation4 + $0x50] sm:$0xff]
          %v822 = vld [vmem:[#allocation4 + $0x58] sm:$0xff]
          %v823 = vld [vmem:[#allocation4 + $0x60] sm:$0xff]
          %v824 = vld [vmem:[#allocation4 + $0x68] sm:$0xff]
          %v825 = vld [vmem:[#allocation4 + $0x70] sm:$0xff]
          %v826 = vld [vmem:[#allocation4 + $0x78] sm:$0xff]
          %v827 = vld [vmem:[%s4] sm:$0x3]
          %v829 = vlaneseq
          %v830 = vshrl.u32 %v829, 7
          %v831 = vsub.s32 0, %v830
          %v832 = vrot.slane %v827, %v831
          %v833 = vlaneseq
          %v834 = vshrl.u32 %v833, 7
          %v835 = vsub.s32 1, %v834
          %v836 = vrot.slane %v827, %v835
          %v855 = vunpack.c.l.b16 %v811
          %v856 = vunpack.c.h.b16 %v811
          %v857 = vunpack.c.l.b16 %v812
          %v858 = vunpack.c.h.b16 %v812
          %v859 = vunpack.c.l.b16 %v813
          %v860 = vunpack.c.h.b16 %v813
          %v861 = vunpack.c.l.b16 %v814
          %v862 = vunpack.c.h.b16 %v814
          %v863 = vunpack.c.l.b16 %v815
          %v864 = vunpack.c.h.b16 %v815
          %v865 = vunpack.c.l.b16 %v816
          %v866 = vunpack.c.h.b16 %v816
          %v867 = vunpack.c.l.b16 %v817
          %v868 = vunpack.c.h.b16 %v817
          %v869 = vunpack.c.l.b16 %v818
          %v870 = vunpack.c.h.b16 %v818
          %v871 = vunpack.c.l.b16 %v819
          %v872 = vunpack.c.h.b16 %v819
          %v873 = vunpack.c.l.b16 %v820
          %v874 = vunpack.c.h.b16 %v820
          %v875 = vunpack.c.l.b16 %v821
          %v876 = vunpack.c.h.b16 %v821
          %v877 = vunpack.c.l.b16 %v822
          %v878 = vunpack.c.h.b16 %v822
          %v879 = vunpack.c.l.b16 %v823
          %v880 = vunpack.c.h.b16 %v823
          %v881 = vunpack.c.l.b16 %v824
          %v882 = vunpack.c.h.b16 %v824
          %v883 = vunpack.c.l.b16 %v825
          %v884 = vunpack.c.h.b16 %v825
          %v885 = vunpack.c.l.b16 %v826
          %v886 = vunpack.c.h.b16 %v826
          %v887 = vpack.c.b16 %v857, %v855
          %v888 = vpack.c.b16 %v858, %v856
          %v889 = vpack.c.b16 %v861, %v859
          %v890 = vpack.c.b16 %v862, %v860
          %v891 = vpack.c.b16 %v865, %v863
          %v892 = vpack.c.b16 %v866, %v864
          %v893 = vpack.c.b16 %v869, %v867
          %v894 = vpack.c.b16 %v870, %v868
          %v895 = vpack.c.b16 %v873, %v871
          %v896 = vpack.c.b16 %v874, %v872
          %v897 = vpack.c.b16 %v877, %v875
          %v898 = vpack.c.b16 %v878, %v876
          %v899 = vpack.c.b16 %v881, %v879
          %v900 = vpack.c.b16 %v882, %v880
          %v901 = vpack.c.b16 %v885, %v883
          %v902 = vpack.c.b16 %v886, %v884
          %919 = vmatprep.subr.bf16.mxu0 %v888
          %920 = vmatpush1.bf16.msra.mxu0 %v887
          %921 = vmatprep.subr.bf16.mxu0 %v890
          %922 = vmatpush1.bf16.msra.mxu0 %v889
          %923 = vmatprep.subr.bf16.mxu0 %v892
          %924 = vmatpush1.bf16.msra.mxu0 %v891
          %925 = vmatprep.subr.bf16.mxu0 %v894
          %926 = vmatpush1.bf16.msra.mxu0 %v893
          %927 = vmatprep.subr.bf16.mxu0 %v896
          %928 = vmatpush1.bf16.msra.mxu0 %v895
          %929 = vmatprep.subr.bf16.mxu0 %v898
          %930 = vmatpush1.bf16.msra.mxu0 %v897
          %931 = vmatprep.subr.bf16.mxu0 %v900
          %932 = vmatpush1.bf16.msra.mxu0 %v899
          %933 = vmatprep.subr.bf16.mxu0 %v902
          %934 = vmatpush1.bf16.msra.mxu0 %v901
          %935 = vmatprep.subr.bf16.mxu0 0
          %936 = vmatpush1.bf16.msra.mxu0 0
          %937 = vmatprep.subr.bf16.mxu0 0
          %938 = vmatpush1.bf16.msra.mxu0 0
          %939 = vmatprep.subr.bf16.mxu0 0
          %940 = vmatpush1.bf16.msra.mxu0 0
          %941 = vmatprep.subr.bf16.mxu0 0
          %942 = vmatpush1.bf16.msra.mxu0 0
          %943 = vmatprep.subr.bf16.mxu0 0
          %944 = vmatpush1.bf16.msra.mxu0 0
          %945 = vmatprep.subr.bf16.mxu0 0
          %946 = vmatpush1.bf16.msra.mxu0 0
          %947 = vmatprep.subr.bf16.mxu0 0
          %948 = vmatpush1.bf16.msra.mxu0 0
          %949 = vmatprep.subr.bf16.mxu0 0
          %950 = vmatpush1.bf16.msra.mxu0 0
          %951 = vmatprep.mubr.bf16.mxu0 0
          %952 = vmatmul.mubr.bf16.gmra.mrb[0].mxu0 %v810
          %v953 = vpop.f32.mrb[0].mxu0
          %v954 = vadd.f32 %v832, %v953
          %v955 = vpop.f32.mrb[0].mxu0
          %v956 = vadd.f32 %v836, %v955
          %v957 = vpop.f32.mrb[0].mxu0
          %v958 = vadd.f32 %v832, %v957
          %v959 = vpop.f32.mrb[0].mxu0
          %v960 = vadd.f32 %v836, %v959
          %961 = vdwg.mxu0
          %v962 = vmax.f32 %v954, 0.0
          %v963 = vmax.f32 %v956, 0.0
          %v964 = vmax.f32 %v958, 0.0
          %v965 = vmax.f32 %v960, 0.0
          %v966 = vpack.c.bf16 %v964, %v962
          %v967 = vpack.c.bf16 %v965, %v963
          %v968 = vld [vmem:[#allocation6] sm:$0xff]
          %v969 = vld [vmem:[#allocation6 + $0x8] sm:$0xff]
          %v970 = vld [vmem:[#allocation6 + $0x10] sm:$0xff]
          %v971 = vld [vmem:[#allocation6 + $0x18] sm:$0xff]
          %v972 = vld [vmem:[#allocation6 + $0x20] sm:$0xff]
          %v973 = vld [vmem:[#allocation6 + $0x28] sm:$0xff]
          %v974 = vld [vmem:[#allocation6 + $0x30] sm:$0xff]
          %v975 = vld [vmem:[#allocation6 + $0x38] sm:$0xff]
          %v976 = vld [vmem:[#allocation6 + $0x40] sm:$0xff]
          %v977 = vld [vmem:[#allocation6 + $0x48] sm:$0xff]
          %v978 = vld [vmem:[#allocation6 + $0x50] sm:$0xff]
          %v979 = vld [vmem:[#allocation6 + $0x58] sm:$0xff]
          %v980 = vld [vmem:[#allocation6 + $0x60] sm:$0xff]
          %v981 = vld [vmem:[#allocation6 + $0x68] sm:$0xff]
          %v982 = vld [vmem:[#allocation6 + $0x70] sm:$0xff]
          %v983 = vld [vmem:[#allocation6 + $0x78] sm:$0xff]
          %v984 = vld [vmem:[#allocation6 + $0x80] sm:$0xff]
          %v985 = vld [vmem:[#allocation6 + $0x88] sm:$0xff]
          %v986 = vld [vmem:[#allocation6 + $0x90] sm:$0xff]
          %v987 = vld [vmem:[#allocation6 + $0x98] sm:$0xff]
          %v988 = vld [vmem:[#allocation6 + $0xa0] sm:$0xff]
          %v989 = vld [vmem:[#allocation6 + $0xa8] sm:$0xff]
          %v990 = vld [vmem:[#allocation6 + $0xb0] sm:$0xff]
          %v991 = vld [vmem:[#allocation6 + $0xb8] sm:$0xff]
          %v992 = vld [vmem:[#allocation6 + $0xc0] sm:$0xff]
          %v993 = vld [vmem:[#allocation6 + $0xc8] sm:$0xff]
          %v994 = vld [vmem:[#allocation6 + $0xd0] sm:$0xff]
          %v995 = vld [vmem:[#allocation6 + $0xd8] sm:$0xff]
          %v996 = vld [vmem:[#allocation6 + $0xe0] sm:$0xff]
          %v997 = vld [vmem:[#allocation6 + $0xe8] sm:$0xff]
          %v998 = vld [vmem:[#allocation6 + $0xf0] sm:$0xff]
          %v999 = vld [vmem:[#allocation6 + $0xf8] sm:$0xff]
          %v1000 = vld [vmem:[%s6] sm:$0x3]
          %v1002 = vlaneseq
          %v1003 = vshrl.u32 %v1002, 7
          %v1004 = vsub.s32 0, %v1003
          %v1005 = vrot.slane %v1000, %v1004
          %v1006 = vlaneseq
          %v1007 = vshrl.u32 %v1006, 7
          %v1008 = vsub.s32 1, %v1007
          %v1009 = vrot.slane %v1000, %v1008
          %v1044 = vunpack.c.l.b16 %v968
          %v1045 = vunpack.c.h.b16 %v968
          %v1046 = vunpack.c.l.b16 %v969
          %v1047 = vunpack.c.h.b16 %v969
          %v1048 = vunpack.c.l.b16 %v970
          %v1049 = vunpack.c.h.b16 %v970
          %v1050 = vunpack.c.l.b16 %v971
          %v1051 = vunpack.c.h.b16 %v971
          %v1052 = vunpack.c.l.b16 %v972
          %v1053 = vunpack.c.h.b16 %v972
          %v1054 = vunpack.c.l.b16 %v973
          %v1055 = vunpack.c.h.b16 %v973
          %v1056 = vunpack.c.l.b16 %v974
          %v1057 = vunpack.c.h.b16 %v974
          %v1058 = vunpack.c.l.b16 %v975
          %v1059 = vunpack.c.h.b16 %v975
          %v1060 = vunpack.c.l.b16 %v976
          %v1061 = vunpack.c.h.b16 %v976
          %v1062 = vunpack.c.l.b16 %v977
          %v1063 = vunpack.c.h.b16 %v977
          %v1064 = vunpack.c.l.b16 %v978
          %v1065 = vunpack.c.h.b16 %v978
          %v1066 = vunpack.c.l.b16 %v979
          %v1067 = vunpack.c.h.b16 %v979
          %v1068 = vunpack.c.l.b16 %v980
          %v1069 = vunpack.c.h.b16 %v980
          %v1070 = vunpack.c.l.b16 %v981
          %v1071 = vunpack.c.h.b16 %v981
          %v1072 = vunpack.c.l.b16 %v982
          %v1073 = vunpack.c.h.b16 %v982
          %v1074 = vunpack.c.l.b16 %v983
          %v1075 = vunpack.c.h.b16 %v983
          %v1076 = vunpack.c.l.b16 %v984
          %v1077 = vunpack.c.h.b16 %v984
          %v1078 = vunpack.c.l.b16 %v985
          %v1079 = vunpack.c.h.b16 %v985
          %v1080 = vunpack.c.l.b16 %v986
          %v1081 = vunpack.c.h.b16 %v986
          %v1082 = vunpack.c.l.b16 %v987
          %v1083 = vunpack.c.h.b16 %v987
          %v1084 = vunpack.c.l.b16 %v988
          %v1085 = vunpack.c.h.b16 %v988
          %v1086 = vunpack.c.l.b16 %v989
          %v1087 = vunpack.c.h.b16 %v989
          %v1088 = vunpack.c.l.b16 %v990
          %v1089 = vunpack.c.h.b16 %v990
          %v1090 = vunpack.c.l.b16 %v991
          %v1091 = vunpack.c.h.b16 %v991
          %v1092 = vunpack.c.l.b16 %v992
          %v1093 = vunpack.c.h.b16 %v992
          %v1094 = vunpack.c.l.b16 %v993
          %v1095 = vunpack.c.h.b16 %v993
          %v1096 = vunpack.c.l.b16 %v994
          %v1097 = vunpack.c.h.b16 %v994
          %v1098 = vunpack.c.l.b16 %v995
          %v1099 = vunpack.c.h.b16 %v995
          %v1100 = vunpack.c.l.b16 %v996
          %v1101 = vunpack.c.h.b16 %v996
          %v1102 = vunpack.c.l.b16 %v997
          %v1103 = vunpack.c.h.b16 %v997
          %v1104 = vunpack.c.l.b16 %v998
          %v1105 = vunpack.c.h.b16 %v998
          %v1106 = vunpack.c.l.b16 %v999
          %v1107 = vunpack.c.h.b16 %v999
          %v1108 = vpack.c.b16 %v1046, %v1044
          %v1109 = vpack.c.b16 %v1047, %v1045
          %v1110 = vpack.c.b16 %v1050, %v1048
          %v1111 = vpack.c.b16 %v1051, %v1049
          %v1112 = vpack.c.b16 %v1054, %v1052
          %v1113 = vpack.c.b16 %v1055, %v1053
          %v1114 = vpack.c.b16 %v1058, %v1056
          %v1115 = vpack.c.b16 %v1059, %v1057
          %v1116 = vpack.c.b16 %v1062, %v1060
          %v1117 = vpack.c.b16 %v1063, %v1061
          %v1118 = vpack.c.b16 %v1066, %v1064
          %v1119 = vpack.c.b16 %v1067, %v1065
          %v1120 = vpack.c.b16 %v1070, %v1068
          %v1121 = vpack.c.b16 %v1071, %v1069
          %v1122 = vpack.c.b16 %v1074, %v1072
          %v1123 = vpack.c.b16 %v1075, %v1073
          %v1124 = vpack.c.b16 %v1078, %v1076
          %v1125 = vpack.c.b16 %v1079, %v1077
          %v1126 = vpack.c.b16 %v1082, %v1080
          %v1127 = vpack.c.b16 %v1083, %v1081
          %v1128 = vpack.c.b16 %v1086, %v1084
          %v1129 = vpack.c.b16 %v1087, %v1085
          %v1130 = vpack.c.b16 %v1090, %v1088
          %v1131 = vpack.c.b16 %v1091, %v1089
          %v1132 = vpack.c.b16 %v1094, %v1092
          %v1133 = vpack.c.b16 %v1095, %v1093
          %v1134 = vpack.c.b16 %v1098, %v1096
          %v1135 = vpack.c.b16 %v1099, %v1097
          %v1136 = vpack.c.b16 %v1102, %v1100
          %v1137 = vpack.c.b16 %v1103, %v1101
          %v1138 = vpack.c.b16 %v1106, %v1104
          %v1139 = vpack.c.b16 %v1107, %v1105
          %1172 = vmatprep.subr.bf16.mxu0 %v1109
          %1173 = vmatpush1.bf16.msra.mxu0 %v1108
          %1174 = vmatprep.subr.bf16.mxu0 %v1111
          %1175 = vmatpush1.bf16.msra.mxu0 %v1110
          %1176 = vmatprep.subr.bf16.mxu0 %v1113
          %1177 = vmatpush1.bf16.msra.mxu0 %v1112
          %1178 = vmatprep.subr.bf16.mxu0 %v1115
          %1179 = vmatpush1.bf16.msra.mxu0 %v1114
          %1180 = vmatprep.subr.bf16.mxu0 %v1117
          %1181 = vmatpush1.bf16.msra.mxu0 %v1116
          %1182 = vmatprep.subr.bf16.mxu0 %v1119
          %1183 = vmatpush1.bf16.msra.mxu0 %v1118
          %1184 = vmatprep.subr.bf16.mxu0 %v1121
          %1185 = vmatpush1.bf16.msra.mxu0 %v1120
          %1186 = vmatprep.subr.bf16.mxu0 %v1123
          %1187 = vmatpush1.bf16.msra.mxu0 %v1122
          %1188 = vmatprep.subr.bf16.mxu0 %v1125
          %1189 = vmatpush1.bf16.msra.mxu0 %v1124
          %1190 = vmatprep.subr.bf16.mxu0 %v1127
          %1191 = vmatpush1.bf16.msra.mxu0 %v1126
          %1192 = vmatprep.subr.bf16.mxu0 %v1129
          %1193 = vmatpush1.bf16.msra.mxu0 %v1128
          %1194 = vmatprep.subr.bf16.mxu0 %v1131
          %1195 = vmatpush1.bf16.msra.mxu0 %v1130
          %1196 = vmatprep.subr.bf16.mxu0 %v1133
          %1197 = vmatpush1.bf16.msra.mxu0 %v1132
          %1198 = vmatprep.subr.bf16.mxu0 %v1135
          %1199 = vmatpush1.bf16.msra.mxu0 %v1134
          %1200 = vmatprep.subr.bf16.mxu0 %v1137
          %1201 = vmatpush1.bf16.msra.mxu0 %v1136
          %1202 = vmatprep.subr.bf16.mxu0 %v1139
          %1203 = vmatpush1.bf16.msra.mxu0 %v1138
          %1204 = vmatprep.mubr.bf16.mxu0 %v967
          %1205 = vmatmul.mubr.bf16.gmra.mrb[0].mxu0 %v966
          %v1206 = vpop.f32.mrb[0].mxu0
          %v1207 = vadd.f32 %v1005, %v1206
          %v1208 = vpop.f32.mrb[0].mxu0
          %v1209 = vadd.f32 %v1009, %v1208
          %v1210 = vpop.f32.mrb[0].mxu0
          %v1211 = vadd.f32 %v1005, %v1210
          %v1212 = vpop.f32.mrb[0].mxu0
          %v1213 = vadd.f32 %v1009, %v1212
          %1214 = vdwg.mxu0
          %v1215 = vmul.f32 %v1207, %v1207
          %v1216 = vmul.f32 %v1211, %v1211
          %1217 = vadd.xlane.f32.xlu0 %v1215
          %v1218 = vpop.xlane.xlu0 %1217
          %1219 = vadd.xlane.f32.xlu0 %v1216
          %v1220 = vpop.xlane.xlu0 %1219
          %v1221 = vadd.f32 %v1218, 1e-24
          %v1222 = vadd.f32 %v1220, 1e-24
          %v1223 = vrsqrt.pop %v1221
          %v1224 = vrsqrt.pop %v1222
          %v1225 = vmul.f32 %v1207, %v1223
          %v1226 = vmul.f32 %v1211, %v1224
          %1227 = vst [vmem:[%s410] sm:$0xff] %v1225
          %1228 = vst [vmem:[%s410 + $0x8] sm:$0xff] %v1226
          %v1229 = vlaneseq
          %v1230 = vand.u32 %v1229, 127
          %vm1231 = vcmp.lt.s32.totalorder %v1230, 8
          %v1232 = vsel %vm1231, %v1209, -inf
          %v1233 = vsel %vm1231, %v1213, -inf
          %1234 = vmax.xlane.f32.xlu0 %v1232
          %v1235 = vpop.xlane.xlu0 %1234
          %1236 = vmax.xlane.f32.xlu0 %v1233
          %v1237 = vpop.xlane.xlu0 %1236
          %v1238 = vsub.f32 %v1232, %v1235
          %v1239 = vsub.f32 %v1233, %v1237
          %v1240 = vmul.f32 %v1238, 1.442695
          %v1241 = vpow.pop %v1240
          %v1242 = vmul.f32 %v1239, 1.442695
          %v1243 = vpow.pop %v1242
          %v1244 = vsel %vm1231, %v1241, 0.0
          %v1245 = vsel %vm1231, %v1243, 0.0
          %1246 = vadd.xlane.f32.xlu0 %v1244
          %v1247 = vpop.xlane.xlu0 %1246
          %1248 = vadd.xlane.f32.xlu0 %v1245
          %v1249 = vpop.xlane.xlu0 %1248
          %v1250 = vrcp.pop %v1247
          %v1251 = vrcp.pop %v1249
          %v1252 = vmul.f32 %v1244, %v1250
          %v1253 = vmul.f32 %v1245, %v1251
          %1254 = vst [vmem:[%s416] sm:$0xff] %v1252
          %1255 = vst [vmem:[%s416 + $0x8] sm:$0xff] %v1253
        $region87: #{_lambda_.1} parent=66 // pred_fallthru
          _
        %s1256 = smul.u32 2, %s26
        %p1257 = scmp.lt.s32.totalorder %s1256, 1
        %s1258 = scalar_select %p1257, %s1256, 1
        %s1259 = smul.addr %s1258, 8
        %s1260 = scalar_lea.vmem %s7, %s1259
        %s1261 = smul.u32 2, %s26
        %p1262 = scmp.lt.s32.totalorder %s1261, 1
        %s1263 = scalar_select %p1262, %s1261, 1
        %s1264 = smul.addr %s1263, 8
        %s1265 = scalar_lea.vmem %s8, %s1264
        // Predicated region
        $region88: #{_lambda_.1} parent=66 // pred_check
          %p1266 = pneg %p211
        $region89: #{_lambda_.1} parent=66 // pred_check_branch
          %1268 = sbr.rel (%p1266) target = $region91
        $region90: #{_lambda_.1} parent=66 // pred_region
          %s1269 = smul.u32 2, %s26
        $region91: #{_lambda_.1} parent=66 // pred_fallthru
          _
        // Predicated region
        $region92: #{_lambda_.1} parent=66 // pred_check
          %p1270 = pneg %p237
        $region93: #{_lambda_.1} parent=66 // pred_check_branch
          %1272 = sbr.rel (%p1270) target = $region95
        $region94: #{_lambda_.1} parent=66 // pred_region
          %s1273 = smul.u32 2, %s26
        $region95: #{_lambda_.1} parent=66 // pred_fallthru
          _
        // Predicated region
        $region96: #{_lambda_.1} parent=66 // pred_check
          %p1274 = pneg %p211
        $region97: #{_lambda_.1} parent=66 // pred_check_branch
          %1276 = sbr.rel (%p1274) target = $region99
        $region98: #{_lambda_.1} parent=66 // pred_region
          %s1277 = smul.u32 2, %s26
          %p1278 = scmp.lt.s32.totalorder %s1277, 1
          %s1279 = scalar_select %p1278, %s1277, 1
          %s1280 = smul.addr %s1279, 8
          %s1281 = scalar_lea.vmem %s7, %s1280
        $region99: #{_lambda_.1} parent=66 // pred_fallthru
          _
        // Predicated region
        $region100: #{_lambda_.1} parent=66 // pred_check
          %p1282 = pneg %p237
        $region101: #{_lambda_.1} parent=66 // pred_check_branch
          %1284 = sbr.rel (%p1282) target = $region103
        $region102: #{_lambda_.1} parent=66 // pred_region
          %s1285 = smul.u32 2, %s26
          %p1286 = scmp.lt.s32.totalorder %s1285, 1
          %s1287 = scalar_select %p1286, %s1285, 1
          %s1288 = smul.addr %s1287, 8
          %s1289 = scalar_lea.vmem %s8, %s1288
        $region103: #{_lambda_.1} parent=66 // pred_fallthru
          _
      $region67: #{_lambda_.1} parent=5 // pred_fallthru
        _
      %p1290 = scmp.le.s32.totalorder 2, %s17
      // Predicated region
      $region104: #{_lambda_.1} parent=5 // pred_check
        %p1291 = pneg %p1290
      $region105: #{_lambda_.1} parent=5 // pred_check_branch
        %1293 = sbr.rel (%p1291) target = $region107
      $region106: #{_lambda_.1} parent=5 // pred_region
        %s1294 = ssub.s32 %s17, 2
      $region107: #{_lambda_.1} parent=5 // pred_fallthru
        _
    $region6: #{_lambda_.1} parent=1 // loop_footer
      %s21 = sadd.s32 1, %s17
    $region7: #{_lambda_.1} parent=1 // loop_footer_branch
      %16 = sbr.rel target = $region3
    $region8: #{_lambda_.1} parent=1 // loop_exit
      _
    %1295 = vsyncpa [#allocation5], 1
    %s1296 = scalar_lea.sflag [#allocation5], 1
    %1297 = vsyncpa %s1296, 1
    %1298 = vsyncpa [#allocation7], 1

</llo_original>
